<compile_context>
chip_gen: v7x
topology: tpu7x:2x2x1
jax: 0.10.0
libtpu: 0.0.40
codegen_flags: <defaults>
</compile_context>

<pallas_src>
import functools

import jax
import jax.numpy as jnp
from jax import lax
from jax.experimental import pallas as pl
from jax.experimental.pallas import tpu as pltpu

KEY_DIM = 16
PATCH_SIZE = 16

LANE = 128     # vreg lane width
SUBLANE = 8    # vreg sublane count


def _round_up(v, m):
    return (v + m - 1) // m * m


def _self_attention_kernel(x_ref, w_ref, o_ref, *, batch, seq, seg):
    """Fused QKV projection + batch-axis-softmax attention (single program).

    x_ref: (batch*seq, P)     flattened patches, NO contraction-dim padding
                              (block shape == full array dims; the MXU pads
                              the 16-deep contraction internally).
    w_ref: (P, 3*seg)         [Wq | Wk | Wv], each in its own 128-lane segment
                              (columns beyond key_dim are zero).
    o_ref: (batch*seq, seg)   z, lane-dense; real key_dim lives in cols [:K].
    """
    x = x_ref[...]
    w = w_ref[...]

    # One fused MXU matmul for Q, K and V (one push/drain round-trip instead
    # of three tiny 16x16x16 matmuls).
    qkv = jnp.dot(x, w, preferred_element_type=jnp.float32)    # (B*N, 3*seg)
    q = qkv[:, 0:seg]              # 128-lane-tile-aligned slices: no relayout
    k = qkv[:, seg:2 * seg]
    v = qkv[:, 2 * seg:3 * seg]

    # torch.div(..., 3) applied as a multiply (avoids vdiv; differs from /3 by
    # at most 1 ulp, well inside the 1e-4 tolerance).
    inv_scale = jnp.float32(1.0 / 3.0)

    # Unrolled per-batch 2-D dots (batch is tiny and static): avoids
    # batched-einsum relayouts over a size-2 leading dim.
    scores = []
    values = []
    for b in range(batch):
        lo = b * seq                        # multiple of 8 -> sublane-aligned
        qb = q[lo:lo + seq, :]
        kb = k[lo:lo + seq, :]
        values.append(v[lo:lo + seq, :])
        # q @ k^T; contraction over the zero lanes beyond key_dim is exact.
        sb = lax.dot_general(qb, kb, (((1,), (1,)), ((), ())),
                             preferred_element_type=jnp.float32)
        scores.append(sb * inv_scale)

    # PyTorch F.softmax with no `dim=` on a 3-D tensor => legacy implicit
    # dim=0: normalize across the BATCH axis of the (B, N, N) score tensor.
    # NOTE: the lane-padding exactness (zero V columns beyond key_dim) relies
    # on the softmax coupling only the batch axis; revisit if the softmax axis
    # is ever "fixed" to the key axis.
    m = scores[0]
    for sb in scores[1:]:
        m = jnp.maximum(m, sb)
    exps = [jnp.exp(sb - m) for sb in scores]
    denom = exps[0]
    for eb in exps[1:]:
        denom = denom + eb
    # Exact reciprocal (approx=True would go to the otherwise-idle EUP slot,
    # but only adopt it after re-verifying the 1e-4 tolerance).
    inv_denom = pl.reciprocal(denom)

    for b in range(batch):
        attn_b = exps[b] * inv_denom                          # (N, N)
        zb = jnp.dot(attn_b, values[b],
                     preferred_element_type=jnp.float32)      # (N, seg)
        # Full-width (128-lane) unmasked store per batch block.
        o_ref[b * seq:(b + 1) * seq, :] = zb.astype(o_ref.dtype)


def fuse_qkv_weights(wq, wk, wv):
    """Build the fused, lane-segmented [Wq | Wk | Wv] weight ONCE.

    This is a pure function of the parameters -- build it when the weights are
    created, not per forward call.  No contraction-dim padding.
    """
    p, k = wq.shape
    seg = _round_up(k, LANE)
    w = jnp.zeros((p, 3 * seg), jnp.float32)
    w = w.at[:, 0:k].set(wq.astype(jnp.float32))
    w = w.at[:, seg:seg + k].set(wk.astype(jnp.float32))
    w = w.at[:, 2 * seg:2 * seg + k].set(wv.astype(jnp.float32))
    return w


@functools.partial(jax.jit, static_argnames=("key_dim",))
def self_attention(x, w_fused, key_dim=KEY_DIM):
    """x: (B, N, P) f32; w_fused: (P, 3*seg) prebuilt -> z: (B, N, key_dim)."""
    B, N, P = x.shape
    seg = w_fused.shape[1] // 3
    K = key_dim

    n_pad = _round_up(N, SUBLANE)
    if n_pad != N:
        # Static fallback only; a no-op (not emitted) for sublane-aligned N.
        x = jnp.zeros((B, n_pad, P), x.dtype).at[:, :N, :].set(x)
    x_flat = x.reshape(B * n_pad, P)        # metadata-only reshape, no copy

    # Real (unpadded) work: ~33 KF, ~33 KiB at B=2, N=8.
    flops = (2 * B * n_pad * P * 3 * K        # fused QKV projection
             + 2 * B * n_pad * n_pad * K      # Q @ K^T
             + 2 * B * n_pad * n_pad * K)     # attn @ V
    transcendentals = B * n_pad * n_pad       # exp
    bytes_accessed = 4 * (x_flat.size + w_fused.size + B * n_pad * seg)

    vmem = pl.BlockSpec(memory_space=pltpu.MemorySpace.VMEM)
    kernel = functools.partial(_self_attention_kernel,
                               batch=B, seq=n_pad, seg=seg)

    out = pl.pallas_call(
        kernel,
        out_shape=jax.ShapeDtypeStruct((B * n_pad, seg), jnp.float32),
        in_specs=[vmem, vmem],
        out_specs=vmem,
        cost_estimate=pl.CostEstimate(flops=flops,
                                      transcendentals=transcendentals,
                                      bytes_accessed=bytes_accessed),
    )(x_flat, w_fused)

    # Strip lane (and any sublane) padding -- metadata slicing outside kernel.
    return out.reshape(B, n_pad, seg)[:, :N, :K]


def self_attention_ref(x, wq, wk, wv):
    """Pure-JAX reference with identical (legacy dim=0 softmax) semantics."""
    q = jnp.einsum("bnp,pk->bnk", x, wq)
    k = jnp.einsum("bnp,pk->bnk", x, wk)
    v = jnp.einsum("bnp,pk->bnk", x, wv)
    s = jnp.einsum("bik,bjk->bij", q, k) / 3.0
    attn = jax.nn.softmax(s, axis=0)
    return jnp.einsum("bij,bjk->bik", attn, v)


if __name__ == "__main__":
    B, N = 2, 8                      # batch=2, seq=8 patches of size 16
    key = jax.random.PRNGKey(0)
    kx, kq, kk, kv = jax.random.split(key, 4)

    x = jax.random.normal(kx, (B, N, PATCH_SIZE), dtype=jnp.float32)
    Wq = jax.random.normal(kq, (PATCH_SIZE, KEY_DIM), dtype=jnp.float32)
    Wk = jax.random.normal(kk, (PATCH_SIZE, KEY_DIM), dtype=jnp.float32)
    Wv = jax.random.normal(kv, (PATCH_SIZE, KEY_DIM), dtype=jnp.float32)

    # Fused weight built ONCE, outside the per-call path.
    w_fused = jax.block_until_ready(fuse_qkv_weights(Wq, Wk, Wv))

    z = jax.block_until_ready(self_attention(x, w_fused))
    z_ref = self_attention_ref(x, Wq, Wk, Wv)

    assert z.shape == (B, N, KEY_DIM)
    assert jnp.allclose(z, z_ref, atol=1e-4, rtol=1e-4), "mismatch vs reference"
    print("KERNEL_OK")
</pallas_src>

<mosaic_0001>
module attributes {stable_mosaic.version = 11 : i64} {
  func.func @_self_attention_kernel(%arg0: memref<16x16xf32, #tpu.memory_space<vmem>>, %arg1: memref<16x384xf32, #tpu.memory_space<vmem>>, %arg2: memref<16x128xf32, #tpu.memory_space<vmem>>) attributes {dimension_semantics = [], scalar_prefetch = 0 : i64, scratch_operands = 0 : i64, tpu.core_type = #tpu.core_type<tc>} {
    %c0 = arith.constant 0 : index
    %c0_0 = arith.constant 0 : index
    %0 = vector.load %arg0[%c0, %c0_0] : memref<16x16xf32, #tpu.memory_space<vmem>>, vector<16x16xf32>
    %c0_1 = arith.constant 0 : index
    %c0_2 = arith.constant 0 : index
    %1 = vector.load %arg1[%c0_1, %c0_2] : memref<16x384xf32, #tpu.memory_space<vmem>>, vector<16x384xf32>
    %cst = arith.constant dense<0.000000e+00> : vector<16x384xf32>
    %2 = tpu.matmul %0, %1, %cst {dimension_numbers = #tpu.dot_dimension_numbers<[1], [0], [0], [1], [0, 0, 1, 1], [], []>} : vector<16x16xf32>, vector<16x384xf32>, vector<16x384xf32> -> vector<16x384xf32>
    %3 = vector.extract_strided_slice %2 {offsets = [0, 0], sizes = [16, 128], strides = [1, 1]} : vector<16x384xf32> to vector<16x128xf32>
    %4 = vector.extract_strided_slice %2 {offsets = [0, 128], sizes = [16, 128], strides = [1, 1]} : vector<16x384xf32> to vector<16x128xf32>
    %5 = vector.extract_strided_slice %2 {offsets = [0, 256], sizes = [16, 128], strides = [1, 1]} : vector<16x384xf32> to vector<16x128xf32>
    %6 = vector.extract_strided_slice %3 {offsets = [0, 0], sizes = [8, 128], strides = [1, 1]} : vector<16x128xf32> to vector<8x128xf32>
    %7 = vector.extract_strided_slice %4 {offsets = [0, 0], sizes = [8, 128], strides = [1, 1]} : vector<16x128xf32> to vector<8x128xf32>
    %8 = vector.extract_strided_slice %5 {offsets = [0, 0], sizes = [8, 128], strides = [1, 1]} : vector<16x128xf32> to vector<8x128xf32>
    %cst_3 = arith.constant dense<0.000000e+00> : vector<8x8xf32>
    %9 = tpu.matmul %6, %7, %cst_3 {dimension_numbers = #tpu.dot_dimension_numbers<[1], [1], [0], [0], [0, 0, 1, 0], [], []>} : vector<8x128xf32>, vector<8x128xf32>, vector<8x8xf32> -> vector<8x8xf32>
    %cst_4 = arith.constant 0.333333343 : f32
    %10 = vector.broadcast %cst_4 : f32 to vector<8x8xf32>
    %11 = arith.mulf %9, %10 : vector<8x8xf32>
    %12 = vector.extract_strided_slice %3 {offsets = [8, 0], sizes = [8, 128], strides = [1, 1]} : vector<16x128xf32> to vector<8x128xf32>
    %13 = vector.extract_strided_slice %4 {offsets = [8, 0], sizes = [8, 128], strides = [1, 1]} : vector<16x128xf32> to vector<8x128xf32>
    %14 = vector.extract_strided_slice %5 {offsets = [8, 0], sizes = [8, 128], strides = [1, 1]} : vector<16x128xf32> to vector<8x128xf32>
    %cst_5 = arith.constant dense<0.000000e+00> : vector<8x8xf32>
    %15 = tpu.matmul %12, %13, %cst_5 {dimension_numbers = #tpu.dot_dimension_numbers<[1], [1], [0], [0], [0, 0, 1, 0], [], []>} : vector<8x128xf32>, vector<8x128xf32>, vector<8x8xf32> -> vector<8x8xf32>
    %cst_6 = arith.constant 0.333333343 : f32
    %16 = vector.broadcast %cst_6 : f32 to vector<8x8xf32>
    %17 = arith.mulf %15, %16 : vector<8x8xf32>
    %18 = arith.maximumf %11, %17 : vector<8x8xf32>
    %19 = arith.subf %11, %18 : vector<8x8xf32>
    %20 = math.exp %19 : vector<8x8xf32>
    %21 = arith.subf %17, %18 : vector<8x8xf32>
    %22 = math.exp %21 : vector<8x8xf32>
    %23 = arith.addf %20, %22 : vector<8x8xf32>
    %24 = tpu.reciprocal %23 : vector<8x8xf32> -> vector<8x8xf32>
    %25 = arith.mulf %20, %24 : vector<8x8xf32>
    %cst_7 = arith.constant dense<0.000000e+00> : vector<8x128xf32>
    %26 = tpu.matmul %25, %8, %cst_7 {dimension_numbers = #tpu.dot_dimension_numbers<[1], [0], [0], [1], [0, 0, 1, 1], [], []>} : vector<8x8xf32>, vector<8x128xf32>, vector<8x128xf32> -> vector<8x128xf32>
    %c0_8 = arith.constant 0 : index
    %c0_9 = arith.constant 0 : index
    %27 = vector.load %arg2[%c0_8, %c0_9] : memref<16x128xf32, #tpu.memory_space<vmem>>, vector<8x128xf32>
    tpu.vector_store %arg2[%c0_8, %c0_9], %26 {strides = array<i32>} : memref<16x128xf32, #tpu.memory_space<vmem>>, vector<8x128xf32>,
    %28 = arith.mulf %22, %24 : vector<8x8xf32>
    %cst_10 = arith.constant dense<0.000000e+00> : vector<8x128xf32>
    %29 = tpu.matmul %28, %14, %cst_10 {dimension_numbers = #tpu.dot_dimension_numbers<[1], [0], [0], [1], [0, 0, 1, 1], [], []>} : vector<8x8xf32>, vector<8x128xf32>, vector<8x128xf32> -> vector<8x128xf32>
    %c8 = arith.constant 8 : index
    %c0_11 = arith.constant 0 : index
    %30 = vector.load %arg2[%c8, %c0_11] : memref<16x128xf32, #tpu.memory_space<vmem>>, vector<8x128xf32>
    tpu.vector_store %arg2[%c8, %c0_11], %29 {strides = array<i32>} : memref<16x128xf32, #tpu.memory_space<vmem>>, vector<8x128xf32>,
    return
  }
}

</mosaic_0001>

<llo_original>
// kernel: self_attention.1
$region0: #{self_attention.1}
  #allocation0 [shape = 'u32[]', space=smem, size = 0x4, offset = 0x4, fixed_abs, tag = 'smem constant byte address 0x4 - core index']
  #allocation1 [shape = 'u32[144,128]{1,0:T(1,128)}', space=vmem, size = 0x12000, scoped, tag = 'internal scratch']
  %s0 = inlined_call_operand.hbm [shape: f32[16,16], index: 0, kind: input, shape index: {}]
  %s1 = inlined_call_operand.hbm [shape: f32[16,384], index: 1, kind: input, shape index: {}]
  %s2 = inlined_call_operand.hbm [shape: f32[16,128], index: 2, kind: output, shape index: {}]
  %s3 = sld [smem:[#allocation0]]
  $region26: #{self_attention.1} parent=0
    _
  %s5 = ssub.s32 1, %s3
  %s6 = scalar_select 0, %s5, %s3
  $region1: #{self_attention.1} parent=0
    #allocation2 [shape = 'u8[8192]{0}', space=vmem, size = 0x2000, scoped, tag = 'input window, operand 0, single buffered']
    #allocation3 [shape = 's32[1]{0}', space=sflag, size = 0x4, scoped, tag = 'scoped memory for self_attention.1']
    #allocation4 [shape = 's32[1]{0}', space=sflag, size = 0x4, scoped, tag = 'scoped memory for self_attention.1']
    #allocation5 [shape = 'u8[24576]{0}', space=vmem, size = 0x6000, scoped, tag = 'input window, operand 1, single buffered']
    #allocation6 [shape = 's32[1]{0}', space=sflag, size = 0x4, scoped, tag = 'scoped memory for self_attention.1']
    #allocation7 [shape = 'u8[8192]{0}', space=vmem, size = 0x2000, scoped, tag = 'output window, operand 0, single buffered']
    %7 = vsyncpa [#allocation3], 0
    %8 = vsyncpa [#allocation6], 0
    %9 = vsyncpa [#allocation4], 0
    // Predicated region
    $region2: #{self_attention.1} parent=1 // pred_check
      _
    $region3: #{self_attention.1} parent=1 // pred_check_branch
      %11 = sbr.rel (0) target = $region5
    $region4: #{self_attention.1} parent=1 // pred_region
      %s13 = ssub.s32 256, 256
      %14 = vsyncadd [#allocation3], %s13
      %s15 = sshll.u32 [#allocation2], 4
      %s16 = int_to_ptr.vmem [resolvable:$true] %s15
      %21 = dma.hbm_to_vmem [thread:$0]  %s0, 256, %s16, [#allocation3], 128, 128, 8
    $region5: #{self_attention.1} parent=1 // pred_fallthru
      _
    // Predicated region
    $region6: #{self_attention.1} parent=1 // pred_check
      _
    $region7: #{self_attention.1} parent=1 // pred_check_branch
      %23 = sbr.rel (0) target = $region9
    $region8: #{self_attention.1} parent=1 // pred_region
      %s25 = ssub.s32 768, 768
      %26 = vsyncadd [#allocation6], %s25
      %s27 = sshll.u32 [#allocation5], 4
      %s28 = int_to_ptr.vmem [resolvable:$true] %s27
      %33 = dma.hbm_to_vmem [thread:$0]  %s1, 768, %s28, [#allocation6], 384, 384, 24
    $region9: #{self_attention.1} parent=1 // pred_fallthru
      _
    // Predicated region
    $region10: #{self_attention.1} parent=1 // pred_check
      _
    $region11: #{self_attention.1} parent=1 // pred_check_branch
      %35 = sbr.rel (0) target = $region13
    $region12: #{self_attention.1} parent=1 // pred_region
      %36 = dma.done [#allocation3], 256
    $region13: #{self_attention.1} parent=1 // pred_fallthru
      _
    // Predicated region
    $region14: #{self_attention.1} parent=1 // pred_check
      _
    $region15: #{self_attention.1} parent=1 // pred_check_branch
      %38 = sbr.rel (0) target = $region17
    $region16: #{self_attention.1} parent=1 // pred_region
      %39 = dma.done [#allocation6], 768
    $region17: #{self_attention.1} parent=1 // pred_fallthru
      _
    %v40 = vld [vmem:[#allocation2] sm:$0xff]
    %v41 = vld [vmem:[#allocation2 + $0x8] sm:$0xff]
    %v42 = vld [vmem:[#allocation5] sm:$0xff]
    %v43 = vld [vmem:[#allocation5 + $0x8] sm:$0xff]
    %v44 = vld [vmem:[#allocation5 + $0x10] sm:$0xff]
    %v45 = vld [vmem:[#allocation5 + $0x18] sm:$0xff]
    %v46 = vld [vmem:[#allocation5 + $0x20] sm:$0xff]
    %v47 = vld [vmem:[#allocation5 + $0x28] sm:$0xff]
    %vm48 = vcmask 130048
    %v50 = vsel %vm48, %v40, 0
    %v53 = vsel %vm48, %v41, 0
    %55 = vmatprep.subr.mxu0 %v43
    %56 = vmatpush1.msra.mxu0 %v42
    %57 = vmatprep.subr.mxu0 %v46
    %58 = vmatpush1.msra.mxu0 %v45
    %59 = vmatprep.subr.mxu0 0.0
    %60 = vmatpush1.msra.mxu0 0.0
    %61 = vmatprep.subr.mxu0 0.0
    %62 = vmatpush1.msra.mxu0 0.0
    %63 = vmatprep.subr.mxu0 0.0
    %64 = vmatpush1.msra.mxu0 0.0
    %65 = vmatprep.subr.mxu0 0.0
    %66 = vmatpush1.msra.mxu0 0.0
    %67 = vmatprep.subr.mxu0 0.0
    %68 = vmatpush1.msra.mxu0 0.0
    %69 = vmatprep.subr.mxu0 0.0
    %70 = vmatpush1.msra.mxu0 0.0
    %71 = vmatprep.subr.mxu0 0.0
    %72 = vmatpush1.msra.mxu0 0.0
    %73 = vmatprep.subr.mxu0 0.0
    %74 = vmatpush1.msra.mxu0 0.0
    %75 = vmatprep.subr.mxu0 0.0
    %76 = vmatpush1.msra.mxu0 0.0
    %77 = vmatprep.subr.mxu0 0.0
    %78 = vmatpush1.msra.mxu0 0.0
    %79 = vmatprep.subr.mxu0 0.0
    %80 = vmatpush1.msra.mxu0 0.0
    %81 = vmatprep.subr.mxu0 0.0
    %82 = vmatpush1.msra.mxu0 0.0
    %83 = vmatprep.subr.mxu0 0.0
    %84 = vmatpush1.msra.mxu0 0.0
    %85 = vmatprep.subr.mxu0 0.0
    %86 = vmatpush1.msra.mxu0 0.0
    %87 = vmatprep.subr.mxu0 0.0
    %88 = vmatpush1.msra.mxu0 0.0
    %89 = vmatprep.subr.mxu0 0.0
    %90 = vmatpush1.msra.mxu0 0.0
    %91 = vmatprep.subr.mxu0 0.0
    %92 = vmatpush1.msra.mxu0 0.0
    %93 = vmatprep.subr.mxu0 0.0
    %94 = vmatpush1.msra.mxu0 0.0
    %95 = vmatprep.subr.mxu0 0.0
    %96 = vmatpush1.msra.mxu0 0.0
    %97 = vmatprep.subr.mxu0 0.0
    %98 = vmatpush1.msra.mxu0 0.0
    %99 = vmatprep.subr.mxu0 0.0
    %100 = vmatpush1.msra.mxu0 0.0
    %101 = vmatprep.subr.mxu0 0.0
    %102 = vmatpush1.msra.mxu0 0.0
    %103 = vmatprep.subr.mxu0 0.0
    %104 = vmatpush1.msra.mxu0 0.0
    %105 = vmatprep.subr.mxu0 0.0
    %106 = vmatpush1.msra.mxu0 0.0
    %107 = vmatprep.subr.mxu0 0.0
    %108 = vmatpush1.msra.mxu0 0.0
    %109 = vmatprep.subr.mxu0 0.0
    %110 = vmatpush1.msra.mxu0 0.0
    %111 = vmatprep.subr.mxu0 0.0
    %112 = vmatpush1.msra.mxu0 0.0
    %113 = vmatprep.subr.mxu0 0.0
    %114 = vmatpush1.msra.mxu0 0.0
    %115 = vmatprep.subr.mxu0 0.0
    %116 = vmatpush1.msra.mxu0 0.0
    %117 = vmatprep.subr.mxu0 0.0
    %118 = vmatpush1.msra.mxu0 0.0
    %119 = vmatprep.mubr.f32.mxu0 0.0
    %120 = vmatmul.mubr.f32.gmra.mrb[0].mxu0 %v50
    %v121 = vpop.f32.mrb[0].mxu0
    %v122 = vadd.f32 0.0, %v121
    %v123 = vpop.f32.mrb[0].mxu0
    %v124 = vadd.f32 0.0, %v123
    %125 = vmatprep.mubr.f32.mxu0 0.0
    %126 = vmatmul.mubr.f32.gmra.mrb[0].mxu0 %v53
    %v127 = vpop.f32.mrb[0].mxu0
    %v128 = vadd.f32 0.0, %v127
    %v129 = vpop.f32.mrb[0].mxu0
    %v130 = vadd.f32 0.0, %v129
    %131 = vdwg.mxu0
    %132 = vmatprep.subr.mxu0 0.0
    %133 = vmatpush1.msra.mxu0 %v44
    %134 = vmatprep.subr.mxu0 0.0
    %135 = vmatpush1.msra.mxu0 %v47
    %136 = vmatprep.subr.mxu0 0.0
    %137 = vmatpush1.msra.mxu0 0.0
    %138 = vmatprep.subr.mxu0 0.0
    %139 = vmatpush1.msra.mxu0 0.0
    %140 = vmatprep.subr.mxu0 0.0
    %141 = vmatpush1.msra.mxu0 0.0
    %142 = vmatprep.subr.mxu0 0.0
    %143 = vmatpush1.msra.mxu0 0.0
    %144 = vmatprep.subr.mxu0 0.0
    %145 = vmatpush1.msra.mxu0 0.0
    %146 = vmatprep.subr.mxu0 0.0
    %147 = vmatpush1.msra.mxu0 0.0
    %148 = vmatprep.subr.mxu0 0.0
    %149 = vmatpush1.msra.mxu0 0.0
    %150 = vmatprep.subr.mxu0 0.0
    %151 = vmatpush1.msra.mxu0 0.0
    %152 = vmatprep.subr.mxu0 0.0
    %153 = vmatpush1.msra.mxu0 0.0
    %154 = vmatprep.subr.mxu0 0.0
    %155 = vmatpush1.msra.mxu0 0.0
    %156 = vmatprep.subr.mxu0 0.0
    %157 = vmatpush1.msra.mxu0 0.0
    %158 = vmatprep.subr.mxu0 0.0
    %159 = vmatpush1.msra.mxu0 0.0
    %160 = vmatprep.subr.mxu0 0.0
    %161 = vmatpush1.msra.mxu0 0.0
    %162 = vmatprep.subr.mxu0 0.0
    %163 = vmatpush1.msra.mxu0 0.0
    %164 = vmatprep.subr.mxu0 0.0
    %165 = vmatpush1.msra.mxu0 0.0
    %166 = vmatprep.subr.mxu0 0.0
    %167 = vmatpush1.msra.mxu0 0.0
    %168 = vmatprep.subr.mxu0 0.0
    %169 = vmatpush1.msra.mxu0 0.0
    %170 = vmatprep.subr.mxu0 0.0
    %171 = vmatpush1.msra.mxu0 0.0
    %172 = vmatprep.subr.mxu0 0.0
    %173 = vmatpush1.msra.mxu0 0.0
    %174 = vmatprep.subr.mxu0 0.0
    %175 = vmatpush1.msra.mxu0 0.0
    %176 = vmatprep.subr.mxu0 0.0
    %177 = vmatpush1.msra.mxu0 0.0
    %178 = vmatprep.subr.mxu0 0.0
    %179 = vmatpush1.msra.mxu0 0.0
    %180 = vmatprep.subr.mxu0 0.0
    %181 = vmatpush1.msra.mxu0 0.0
    %182 = vmatprep.subr.mxu0 0.0
    %183 = vmatpush1.msra.mxu0 0.0
    %184 = vmatprep.subr.mxu0 0.0
    %185 = vmatpush1.msra.mxu0 0.0
    %186 = vmatprep.subr.mxu0 0.0
    %187 = vmatpush1.msra.mxu0 0.0
    %188 = vmatprep.subr.mxu0 0.0
    %189 = vmatpush1.msra.mxu0 0.0
    %190 = vmatprep.subr.mxu0 0.0
    %191 = vmatpush1.msra.mxu0 0.0
    %192 = vmatprep.subr.mxu0 0.0
    %193 = vmatpush1.msra.mxu0 0.0
    %194 = vmatprep.subr.mxu0 0.0
    %195 = vmatpush1.msra.mxu0 0.0
    %196 = vmatprep.mubr.f32.mxu0 0.0
    %197 = vmatmul.mubr.f32.gmra.mrb[0].mxu0 %v50
    %v198 = vpop.f32.mrb[0].mxu0
    %v199 = vadd.f32 0.0, %v198
    %v200 = vpop.f32.mrb[0].mxu0
    %201 = vmatprep.mubr.f32.mxu0 0.0
    %202 = vmatmul.mubr.f32.gmra.mrb[0].mxu0 %v53
    %v203 = vpop.f32.mrb[0].mxu0
    %v204 = vadd.f32 0.0, %v203
    %v205 = vpop.f32.mrb[0].mxu0
    %206 = vdwg.mxu0
    %207 = vmatprep.subr.mxu0 0.0
    %208 = vmatpush1.xpose.msra.mxu0 %v124
    %209 = vmatprep.subr.mxu0 0.0
    %210 = vmatpush1.xpose.msra.mxu0 0.0
    %211 = vmatprep.subr.mxu0 0.0
    %212 = vmatpush1.xpose.msra.mxu0 0.0
    %213 = vmatprep.subr.mxu0 0.0
    %214 = vmatpush1.xpose.msra.mxu0 0.0
    %215 = vmatprep.subr.mxu0 0.0
    %216 = vmatpush1.xpose.msra.mxu0 0.0
    %217 = vmatprep.subr.mxu0 0.0
    %218 = vmatpush1.xpose.msra.mxu0 0.0
    %219 = vmatprep.subr.mxu0 0.0
    %220 = vmatpush1.xpose.msra.mxu0 0.0
    %221 = vmatprep.subr.mxu0 0.0
    %222 = vmatpush1.xpose.msra.mxu0 0.0
    %223 = vmatprep.subr.mxu0 0.0
    %224 = vmatpush1.xpose.msra.mxu0 0.0
    %225 = vmatprep.subr.mxu0 0.0
    %226 = vmatpush1.xpose.msra.mxu0 0.0
    %227 = vmatprep.subr.mxu0 0.0
    %228 = vmatpush1.xpose.msra.mxu0 0.0
    %229 = vmatprep.subr.mxu0 0.0
    %230 = vmatpush1.xpose.msra.mxu0 0.0
    %231 = vmatprep.subr.mxu0 0.0
    %232 = vmatpush1.xpose.msra.mxu0 0.0
    %233 = vmatprep.subr.mxu0 0.0
    %234 = vmatpush1.xpose.msra.mxu0 0.0
    %235 = vmatprep.subr.mxu0 0.0
    %236 = vmatpush1.xpose.msra.mxu0 0.0
    %237 = vmatprep.subr.mxu0 0.0
    %238 = vmatpush1.xpose.msra.mxu0 0.0
    %239 = vmatprep.subr.mxu0 0.0
    %240 = vmatpush1.xpose.msra.mxu0 0.0
    %241 = vmatprep.subr.mxu0 0.0
    %242 = vmatpush1.xpose.msra.mxu0 0.0
    %243 = vmatprep.subr.mxu0 0.0
    %244 = vmatpush1.xpose.msra.mxu0 0.0
    %245 = vmatprep.subr.mxu0 0.0
    %246 = vmatpush1.xpose.msra.mxu0 0.0
    %247 = vmatprep.subr.mxu0 0.0
    %248 = vmatpush1.xpose.msra.mxu0 0.0
    %249 = vmatprep.subr.mxu0 0.0
    %250 = vmatpush1.xpose.msra.mxu0 0.0
    %251 = vmatprep.subr.mxu0 0.0
    %252 = vmatpush1.xpose.msra.mxu0 0.0
    %253 = vmatprep.subr.mxu0 0.0
    %254 = vmatpush1.xpose.msra.mxu0 0.0
    %255 = vmatprep.subr.mxu0 0.0
    %256 = vmatpush1.xpose.msra.mxu0 0.0
    %257 = vmatprep.subr.mxu0 0.0
    %258 = vmatpush1.xpose.msra.mxu0 0.0
    %259 = vmatprep.subr.mxu0 0.0
    %260 = vmatpush1.xpose.msra.mxu0 0.0
    %261 = vmatprep.subr.mxu0 0.0
    %262 = vmatpush1.xpose.msra.mxu0 0.0
    %263 = vmatprep.subr.mxu0 0.0
    %264 = vmatpush1.xpose.msra.mxu0 0.0
    %265 = vmatprep.subr.mxu0 0.0
    %266 = vmatpush1.xpose.msra.mxu0 0.0
    %267 = vmatprep.subr.mxu0 0.0
    %268 = vmatpush1.xpose.msra.mxu0 0.0
    %269 = vmatprep.subr.mxu0 0.0
    %270 = vmatpush1.xpose.msra.mxu0 0.0
    %271 = vmatprep.mubr.f32.mxu0 0.0
    %272 = vmatmul.mubr.f32.gmra.mrb[0].mxu0 %v122
    %v273 = vpop.f32.mrb[0].mxu0
    %v274 = vadd.f32 0.0, %v273
    %v275 = vpop.f32.mrb[0].mxu0
    %276 = vdwg.mxu0
    %v277 = vmul.f32 %v274, 0.33333334
    %278 = vmatprep.subr.mxu0 0.0
    %279 = vmatpush1.xpose.msra.mxu0 %v130
    %280 = vmatprep.subr.mxu0 0.0
    %281 = vmatpush1.xpose.msra.mxu0 0.0
    %282 = vmatprep.subr.mxu0 0.0
    %283 = vmatpush1.xpose.msra.mxu0 0.0
    %284 = vmatprep.subr.mxu0 0.0
    %285 = vmatpush1.xpose.msra.mxu0 0.0
    %286 = vmatprep.subr.mxu0 0.0
    %287 = vmatpush1.xpose.msra.mxu0 0.0
    %288 = vmatprep.subr.mxu0 0.0
    %289 = vmatpush1.xpose.msra.mxu0 0.0
    %290 = vmatprep.subr.mxu0 0.0
    %291 = vmatpush1.xpose.msra.mxu0 0.0
    %292 = vmatprep.subr.mxu0 0.0
    %293 = vmatpush1.xpose.msra.mxu0 0.0
    %294 = vmatprep.subr.mxu0 0.0
    %295 = vmatpush1.xpose.msra.mxu0 0.0
    %296 = vmatprep.subr.mxu0 0.0
    %297 = vmatpush1.xpose.msra.mxu0 0.0
    %298 = vmatprep.subr.mxu0 0.0
    %299 = vmatpush1.xpose.msra.mxu0 0.0
    %300 = vmatprep.subr.mxu0 0.0
    %301 = vmatpush1.xpose.msra.mxu0 0.0
    %302 = vmatprep.subr.mxu0 0.0
    %303 = vmatpush1.xpose.msra.mxu0 0.0
    %304 = vmatprep.subr.mxu0 0.0
    %305 = vmatpush1.xpose.msra.mxu0 0.0
    %306 = vmatprep.subr.mxu0 0.0
    %307 = vmatpush1.xpose.msra.mxu0 0.0
    %308 = vmatprep.subr.mxu0 0.0
    %309 = vmatpush1.xpose.msra.mxu0 0.0
    %310 = vmatprep.subr.mxu0 0.0
    %311 = vmatpush1.xpose.msra.mxu0 0.0
    %312 = vmatprep.subr.mxu0 0.0
    %313 = vmatpush1.xpose.msra.mxu0 0.0
    %314 = vmatprep.subr.mxu0 0.0
    %315 = vmatpush1.xpose.msra.mxu0 0.0
    %316 = vmatprep.subr.mxu0 0.0
    %317 = vmatpush1.xpose.msra.mxu0 0.0
    %318 = vmatprep.subr.mxu0 0.0
    %319 = vmatpush1.xpose.msra.mxu0 0.0
    %320 = vmatprep.subr.mxu0 0.0
    %321 = vmatpush1.xpose.msra.mxu0 0.0
    %322 = vmatprep.subr.mxu0 0.0
    %323 = vmatpush1.xpose.msra.mxu0 0.0
    %324 = vmatprep.subr.mxu0 0.0
    %325 = vmatpush1.xpose.msra.mxu0 0.0
    %326 = vmatprep.subr.mxu0 0.0
    %327 = vmatpush1.xpose.msra.mxu0 0.0
    %328 = vmatprep.subr.mxu0 0.0
    %329 = vmatpush1.xpose.msra.mxu0 0.0
    %330 = vmatprep.subr.mxu0 0.0
    %331 = vmatpush1.xpose.msra.mxu0 0.0
    %332 = vmatprep.subr.mxu0 0.0
    %333 = vmatpush1.xpose.msra.mxu0 0.0
    %334 = vmatprep.subr.mxu0 0.0
    %335 = vmatpush1.xpose.msra.mxu0 0.0
    %336 = vmatprep.subr.mxu0 0.0
    %337 = vmatpush1.xpose.msra.mxu0 0.0
    %338 = vmatprep.subr.mxu0 0.0
    %339 = vmatpush1.xpose.msra.mxu0 0.0
    %340 = vmatprep.subr.mxu0 0.0
    %341 = vmatpush1.xpose.msra.mxu0 0.0
    %342 = vmatprep.mubr.f32.mxu0 0.0
    %343 = vmatmul.mubr.f32.gmra.mrb[0].mxu0 %v128
    %v344 = vpop.f32.mrb[0].mxu0
    %v345 = vadd.f32 0.0, %v344
    %v346 = vpop.f32.mrb[0].mxu0
    %347 = vdwg.mxu0
    %v348 = vmul.f32 %v345, 0.33333334
    %v349 = vmax.f32 %v277, %v348
    %v350 = vsub.f32 %v277, %v349
    %v351 = vmul.f32 %v350, 1.442695
    %v352 = vpow.pop %v351
    %v353 = vsub.f32 %v348, %v349
    %v354 = vmul.f32 %v353, 1.442695
    %v355 = vpow.pop %v354
    %v356 = vadd.f32 %v352, %v355
    %v357 = vrcp.pop %v356
    %v358 = vmul.f32 %v352, %v357
    %vm359 = vcmask 64512
    %v361 = vsel %vm359, %v358, 0
    %363 = vmatprep.subr.mxu0 0.0
    %364 = vmatpush1.msra.mxu0 %v199
    %365 = vmatprep.subr.mxu0 0.0
    %366 = vmatpush1.msra.mxu0 0.0
    %367 = vmatprep.subr.mxu0 0.0
    %368 = vmatpush1.msra.mxu0 0.0
    %369 = vmatprep.subr.mxu0 0.0
    %370 = vmatpush1.msra.mxu0 0.0
    %371 = vmatprep.subr.mxu0 0.0
    %372 = vmatpush1.msra.mxu0 0.0
    %373 = vmatprep.subr.mxu0 0.0
    %374 = vmatpush1.msra.mxu0 0.0
    %375 = vmatprep.subr.mxu0 0.0
    %376 = vmatpush1.msra.mxu0 0.0
    %377 = vmatprep.subr.mxu0 0.0
    %378 = vmatpush1.msra.mxu0 0.0
    %379 = vmatprep.subr.mxu0 0.0
    %380 = vmatpush1.msra.mxu0 0.0
    %381 = vmatprep.subr.mxu0 0.0
    %382 = vmatpush1.msra.mxu0 0.0
    %383 = vmatprep.subr.mxu0 0.0
    %384 = vmatpush1.msra.mxu0 0.0
    %385 = vmatprep.subr.mxu0 0.0
    %386 = vmatpush1.msra.mxu0 0.0
    %387 = vmatprep.subr.mxu0 0.0
    %388 = vmatpush1.msra.mxu0 0.0
    %389 = vmatprep.subr.mxu0 0.0
    %390 = vmatpush1.msra.mxu0 0.0
    %391 = vmatprep.subr.mxu0 0.0
    %392 = vmatpush1.msra.mxu0 0.0
    %393 = vmatprep.subr.mxu0 0.0
    %394 = vmatpush1.msra.mxu0 0.0
    %395 = vmatprep.subr.mxu0 0.0
    %396 = vmatpush1.msra.mxu0 0.0
    %397 = vmatprep.subr.mxu0 0.0
    %398 = vmatpush1.msra.mxu0 0.0
    %399 = vmatprep.subr.mxu0 0.0
    %400 = vmatpush1.msra.mxu0 0.0
    %401 = vmatprep.subr.mxu0 0.0
    %402 = vmatpush1.msra.mxu0 0.0
    %403 = vmatprep.subr.mxu0 0.0
    %404 = vmatpush1.msra.mxu0 0.0
    %405 = vmatprep.subr.mxu0 0.0
    %406 = vmatpush1.msra.mxu0 0.0
    %407 = vmatprep.subr.mxu0 0.0
    %408 = vmatpush1.msra.mxu0 0.0
    %409 = vmatprep.subr.mxu0 0.0
    %410 = vmatpush1.msra.mxu0 0.0
    %411 = vmatprep.subr.mxu0 0.0
    %412 = vmatpush1.msra.mxu0 0.0
    %413 = vmatprep.subr.mxu0 0.0
    %414 = vmatpush1.msra.mxu0 0.0
    %415 = vmatprep.subr.mxu0 0.0
    %416 = vmatpush1.msra.mxu0 0.0
    %417 = vmatprep.subr.mxu0 0.0
    %418 = vmatpush1.msra.mxu0 0.0
    %419 = vmatprep.subr.mxu0 0.0
    %420 = vmatpush1.msra.mxu0 0.0
    %421 = vmatprep.subr.mxu0 0.0
    %422 = vmatpush1.msra.mxu0 0.0
    %423 = vmatprep.subr.mxu0 0.0
    %424 = vmatpush1.msra.mxu0 0.0
    %425 = vmatprep.subr.mxu0 0.0
    %426 = vmatpush1.msra.mxu0 0.0
    %427 = vmatprep.mubr.f32.mxu0 0.0
    %428 = vmatmul.mubr.f32.gmra.mrb[0].mxu0 %v361
    %v429 = vpop.f32.mrb[0].mxu0
    %v430 = vadd.f32 0.0, %v429
    %v431 = vpop.f32.mrb[0].mxu0
    %432 = vdwg.mxu0
    %433 = vst [vmem:[#allocation7] sm:$0xff] %v430
    %v434 = vmul.f32 %v355, %v357
    %v436 = vsel %vm359, %v434, 0
    %438 = vmatprep.subr.mxu0 0.0
    %439 = vmatpush1.msra.mxu0 %v204
    %440 = vmatprep.subr.mxu0 0.0
    %441 = vmatpush1.msra.mxu0 0.0
    %442 = vmatprep.subr.mxu0 0.0
    %443 = vmatpush1.msra.mxu0 0.0
    %444 = vmatprep.subr.mxu0 0.0
    %445 = vmatpush1.msra.mxu0 0.0
    %446 = vmatprep.subr.mxu0 0.0
    %447 = vmatpush1.msra.mxu0 0.0
    %448 = vmatprep.subr.mxu0 0.0
    %449 = vmatpush1.msra.mxu0 0.0
    %450 = vmatprep.subr.mxu0 0.0
    %451 = vmatpush1.msra.mxu0 0.0
    %452 = vmatprep.subr.mxu0 0.0
    %453 = vmatpush1.msra.mxu0 0.0
    %454 = vmatprep.subr.mxu0 0.0
    %455 = vmatpush1.msra.mxu0 0.0
    %456 = vmatprep.subr.mxu0 0.0
    %457 = vmatpush1.msra.mxu0 0.0
    %458 = vmatprep.subr.mxu0 0.0
    %459 = vmatpush1.msra.mxu0 0.0
    %460 = vmatprep.subr.mxu0 0.0
    %461 = vmatpush1.msra.mxu0 0.0
    %462 = vmatprep.subr.mxu0 0.0
    %463 = vmatpush1.msra.mxu0 0.0
    %464 = vmatprep.subr.mxu0 0.0
    %465 = vmatpush1.msra.mxu0 0.0
    %466 = vmatprep.subr.mxu0 0.0
    %467 = vmatpush1.msra.mxu0 0.0
    %468 = vmatprep.subr.mxu0 0.0
    %469 = vmatpush1.msra.mxu0 0.0
    %470 = vmatprep.subr.mxu0 0.0
    %471 = vmatpush1.msra.mxu0 0.0
    %472 = vmatprep.subr.mxu0 0.0
    %473 = vmatpush1.msra.mxu0 0.0
    %474 = vmatprep.subr.mxu0 0.0
    %475 = vmatpush1.msra.mxu0 0.0
    %476 = vmatprep.subr.mxu0 0.0
    %477 = vmatpush1.msra.mxu0 0.0
    %478 = vmatprep.subr.mxu0 0.0
    %479 = vmatpush1.msra.mxu0 0.0
    %480 = vmatprep.subr.mxu0 0.0
    %481 = vmatpush1.msra.mxu0 0.0
    %482 = vmatprep.subr.mxu0 0.0
    %483 = vmatpush1.msra.mxu0 0.0
    %484 = vmatprep.subr.mxu0 0.0
    %485 = vmatpush1.msra.mxu0 0.0
    %486 = vmatprep.subr.mxu0 0.0
    %487 = vmatpush1.msra.mxu0 0.0
    %488 = vmatprep.subr.mxu0 0.0
    %489 = vmatpush1.msra.mxu0 0.0
    %490 = vmatprep.subr.mxu0 0.0
    %491 = vmatpush1.msra.mxu0 0.0
    %492 = vmatprep.subr.mxu0 0.0
    %493 = vmatpush1.msra.mxu0 0.0
    %494 = vmatprep.subr.mxu0 0.0
    %495 = vmatpush1.msra.mxu0 0.0
    %496 = vmatprep.subr.mxu0 0.0
    %497 = vmatpush1.msra.mxu0 0.0
    %498 = vmatprep.subr.mxu0 0.0
    %499 = vmatpush1.msra.mxu0 0.0
    %500 = vmatprep.subr.mxu0 0.0
    %501 = vmatpush1.msra.mxu0 0.0
    %502 = vmatprep.mubr.f32.mxu0 0.0
    %503 = vmatmul.mubr.f32.gmra.mrb[0].mxu0 %v436
    %v504 = vpop.f32.mrb[0].mxu0
    %v505 = vadd.f32 0.0, %v504
    %v506 = vpop.f32.mrb[0].mxu0
    %507 = vdwg.mxu0
    %508 = vst [vmem:[#allocation7 + $0x8] sm:$0xff] %v505
    // Predicated region
    $region18: #{self_attention.1} parent=1 // pred_check
      _
    $region19: #{self_attention.1} parent=1 // pred_check_branch
      %510 = sbr.rel (0) target = $region21
    $region20: #{self_attention.1} parent=1 // pred_region
      %s512 = ssub.s32 256, 256
      %513 = vsyncadd [#allocation4], %s512
      %s514 = sshll.u32 [#allocation7], 4
      %s515 = int_to_ptr.vmem [resolvable:$true] %s514
      %520 = dma.vmem_to_hbm [thread:$0]  %s515, 256, %s2, [#allocation4], 128, 128, 8
    $region21: #{self_attention.1} parent=1 // pred_fallthru
      _
    // Predicated region
    $region22: #{self_attention.1} parent=1 // pred_check
      _
    $region23: #{self_attention.1} parent=1 // pred_check_branch
      %522 = sbr.rel (0) target = $region25
    $region24: #{self_attention.1} parent=1 // pred_region
      %523 = dma.done [#allocation4], 256
    $region25: #{self_attention.1} parent=1 // pred_fallthru
      _
    %524 = vsyncpa [#allocation3], 1
    %525 = vsyncpa [#allocation6], 1
    %526 = vsyncpa [#allocation4], 1

</llo_original>
